<compile_context>
chip_gen: v7x
topology: tpu7x:2x2x1
jax: 0.10.0
libtpu: 0.0.40
codegen_flags: <defaults>
</compile_context>

<pallas_src>
import functools
import math

import jax
import jax.numpy as jnp
from jax.experimental import pallas as pl
from jax.experimental.pallas import tpu as pltpu


# --------------------------------------------------------------------------
# small helpers
# --------------------------------------------------------------------------
def _round_up(x, m):
    return ((x + m - 1) // m) * m


@functools.lru_cache(maxsize=None)
def _vmem_budget_bytes():
    """Generation-aware VMEM budget (bytes) a single pallas_call may use."""
    cap = None
    try:
        info = pltpu.get_tpu_info()
        cap = getattr(info, "vmem_capacity_bytes", None)
    except Exception:
        cap = None
    if not cap:
        cap = 64 * 1024 * 1024            # conservative: v7x per-TC physical
    # ~25% headroom for Mosaic internal scratch / compiler temporaries; never
    # ask for more than 100 MiB even on 128 MiB (v5e/v6e) parts.
    return int(min(cap * 3 // 4, 100 * 1024 * 1024))


def _pick_m_tile(m, cap=512):
    """M tile (multiple of 16 for bf16 sublane packing) with low padding waste."""
    m16 = _round_up(m, 16)
    if m16 <= cap:
        return m16, m16
    best = None
    for tm in (512, 256, 128):
        if tm > cap:
            continue
        pad = _round_up(m16, tm)
        waste = pad - m16
        if best is None or waste < best[2]:
            best = (tm, pad, waste)
        if waste <= max(tm // 4, m16 // 16):
            return tm, pad
    return best[0], best[1]


def _pick_feature_tile(dim, candidates=(512, 256, 128)):
    """Largest feature tile whose padding waste over round_up(dim,128) is small."""
    base = _round_up(dim, 128)
    for c in candidates:
        pad = _round_up(dim, c)
        if pad - base <= base // 8:
            return c, pad
    return 128, base


def _resident_spec(shape):
    """Full-array block, constant block index -> fetched once, single-buffered."""
    index_map = lambda mi, _n=len(shape): (0,) * _n
    try:
        return pl.BlockSpec(shape, index_map, pipeline_mode=pl.Buffered(1))
    except TypeError:  # older API without pipeline_mode: default double-buffer
        return pl.BlockSpec(shape, index_map)


# --------------------------------------------------------------------------
# Fused FFN kernel: weights VMEM-resident, activations never leave VMEM
# --------------------------------------------------------------------------
def _ffn_fused_kernel(*refs, num_layers):
    # refs = (x_ref, w0, b0, w1, b1, ..., o_ref)
    #   x_ref: (tm, in_pad)  bf16
    #   w_l  : (kp_l, np_l)  bf16   (VMEM-resident across the whole grid)
    #   b_l  : (1,    np_l)  f32
    #   o_ref: (tm, out_pad) f32
    x_ref = refs[0]
    o_ref = refs[-1]

    h = x_ref[...]                                    # bf16
    for l in range(num_layers):
        w = refs[1 + 2 * l][...]
        b = refs[2 + 2 * l][...]
        # MXU matmul: bf16 operands, f32 accumulation; bias add in f32.
        y = jnp.dot(h, w, preferred_element_type=jnp.float32) + b
        if l < num_layers - 1:
            h = jnp.maximum(y, 0.0).astype(jnp.bfloat16)
        else:
            o_ref[...] = y.astype(o_ref.dtype)


def _ffn_fused(params, x2d, out_dim, *, tm, M_pad, vmem_limit):
    M, D = x2d.shape
    L = len(params)
    in_pad = _round_up(D, 128)
    out_pad = _round_up(out_dim, 128)

    xp = jnp.pad(x2d.astype(jnp.bfloat16), ((0, M_pad - M), (0, in_pad - D)))

    operands = [xp]
    in_specs = [pl.BlockSpec((tm, in_pad), lambda mi: (mi, 0))]
    for (w, b) in params:
        kp = _round_up(w.shape[0], 128)
        np_ = _round_up(w.shape[1], 128)
        wp = jnp.pad(w.astype(jnp.bfloat16),
                     ((0, kp - w.shape[0]), (0, np_ - w.shape[1])))
        bp = jnp.pad(b.astype(jnp.float32), (0, np_ - b.shape[0])).reshape(1, np_)
        operands += [wp, bp]
        in_specs += [_resident_spec((kp, np_)), _resident_spec((1, np_))]

    kernel = functools.partial(_ffn_fused_kernel, num_layers=L)

    out = pl.pallas_call(
        kernel,
        out_shape=jax.ShapeDtypeStruct((M_pad, out_pad), jnp.float32),
        grid_spec=pltpu.PrefetchScalarGridSpec(
            num_scalar_prefetch=0,
            grid=(M_pad // tm,),
            in_specs=in_specs,
            out_specs=pl.BlockSpec((tm, out_pad), lambda mi: (mi, 0)),
        ),
        compiler_params=pltpu.CompilerParams(
            dimension_semantics=("parallel",),
            vmem_limit_bytes=vmem_limit),
    )(*operands)

    return out[:M, :out_dim]


# --------------------------------------------------------------------------
# Fallback: per-layer tiled matmul (3-D grid, f32 VMEM accumulator)
# --------------------------------------------------------------------------
def _linear_tiled_kernel(x_ref, w_ref, b_ref, o_ref, acc_ref, *, apply_relu):
    k = pl.program_id(2)

    @pl.when(k == 0)
    def _():
        acc_ref[...] = jnp.zeros_like(acc_ref)

    acc_ref[...] += jnp.dot(x_ref[...], w_ref[...],
                            preferred_element_type=jnp.float32)

    @pl.when(k == pl.num_programs(2) - 1)
    def _():
        y = acc_ref[...] + b_ref[...]
        if apply_relu:
            y = jnp.maximum(y, 0.0)
        o_ref[...] = y.astype(o_ref.dtype)


def pallas_linear_tiled(x2d, w, b, *, apply_relu, out_dtype, vmem_limit):
    """x2d: (M, K) bf16, w: (K, N) bf16, b: (N,) f32 -> (M, N) out_dtype."""
    M, K = x2d.shape
    _, N = w.shape
    feat_candidates = (1024, 512, 256, 128) if vmem_limit >= (80 << 20) \
        else (512, 256, 128)
    tk, K_pad = _pick_feature_tile(K, feat_candidates)
    tn, N_pad = _pick_feature_tile(N, feat_candidates)
    tm, M_pad = _pick_m_tile(M, cap=512)

    xp = jnp.pad(x2d, ((0, M_pad - M), (0, K_pad - K)))
    wp = jnp.pad(w, ((0, K_pad - K), (0, N_pad - N)))
    bp = jnp.pad(b.astype(jnp.float32), (0, N_pad - N)).reshape(1, N_pad)

    kernel = functools.partial(_linear_tiled_kernel, apply_relu=apply_relu)

    out = pl.pallas_call(
        kernel,
        out_shape=jax.ShapeDtypeStruct((M_pad, N_pad), out_dtype),
        grid_spec=pltpu.PrefetchScalarGridSpec(
            num_scalar_prefetch=0,
            grid=(M_pad // tm, N_pad // tn, K_pad // tk),
            in_specs=[
                pl.BlockSpec((tm, tk), lambda i, j, k: (i, k)),
                pl.BlockSpec((tk, tn), lambda i, j, k: (k, j)),
                pl.BlockSpec((1, tn), lambda i, j, k: (0, j)),
            ],
            out_specs=pl.BlockSpec((tm, tn), lambda i, j, k: (i, j)),
            scratch_shapes=[pltpu.VMEM((tm, tn), jnp.float32)],
        ),
        compiler_params=pltpu.CompilerParams(
            dimension_semantics=("parallel", "parallel", "arbitrary"),
            vmem_limit_bytes=vmem_limit),
    )(xp, wp, bp)

    return out[:M, :N]


# --------------------------------------------------------------------------
# FFN module: params + forward
# --------------------------------------------------------------------------
def init_ffn_params(key, in_dim, hidden_dim, out_dim, num_layers):
    """Mimics nn.Linear default init; W stored as (in_dim, out_dim)."""
    h = [hidden_dim] * (num_layers - 1)
    dims = list(zip([in_dim] + h, h + [out_dim]))
    params = []
    for (n_in, n_out) in dims:
        key, kw, kb = jax.random.split(key, 3)
        bound = 1.0 / math.sqrt(n_in)
        w = jax.random.uniform(kw, (n_in, n_out), jnp.float32, -bound, bound)
        b = jax.random.uniform(kb, (n_out,), jnp.float32, -bound, bound)
        params.append((w, b))
    return params


def ffn_forward(params, x, *, force_tiled=False):
    """x: (batch, num_tokens, d_model) -> (batch, num_tokens, out_dim)."""
    B, T, D = x.shape
    M = B * T
    x2d = x.reshape(M, D)
    L = len(params)
    out_dim = params[-1][0].shape[1]

    budget = _vmem_budget_bytes()
    tm, M_pad = _pick_m_tile(M)

    in_pad = _round_up(D, 128)
    pads = [(_round_up(w.shape[0], 128), _round_up(w.shape[1], 128))
            for (w, _) in params]
    out_pad = pads[-1][1]
    max_pad = max([in_pad] + [p[1] for p in pads])

    # VMEM footprint of the fused path (resident weights are single-buffered;
    # x / out blocks are double-buffered; activations estimated at the widest
    # layer), plus a margin for Mosaic internal scratch.
    weight_bytes = sum(kp * np_ * 2 + 8 * np_ * 4 for (kp, np_) in pads)
    io_bytes = 2 * tm * in_pad * 2 + 2 * tm * out_pad * 4
    act_bytes = tm * max_pad * (4 + 2 + 2)
    fused_vmem = weight_bytes + io_bytes + act_bytes + (2 << 20)

    if (not force_tiled) and fused_vmem <= budget:
        out = _ffn_fused(params, x2d, out_dim,
                         tm=tm, M_pad=M_pad, vmem_limit=budget)
        return out.reshape(B, T, out_dim)

    # TODO(synk): add a streamed-weight fused variant (activations resident,
    # weights tiled over an N axis) to avoid per-layer HBM activation round
    # trips when the full weight stack does not fit in VMEM.
    h = x2d.astype(jnp.bfloat16)
    for i, (w, b) in enumerate(params):
        last = (i == L - 1)
        h = pallas_linear_tiled(
            h, w.astype(jnp.bfloat16), b,
            apply_relu=not last,
            out_dtype=jnp.float32 if last else jnp.bfloat16,
            vmem_limit=budget)
    return h.reshape(B, T, out_dim)


# --------------------------------------------------------------------------
# Reference with the same numerics (bf16 operands, f32 accumulation)
# --------------------------------------------------------------------------
def ffn_reference(params, x):
    B, T, D = x.shape
    h = x.reshape(B * T, D).astype(jnp.bfloat16)
    L = len(params)
    for i, (w, b) in enumerate(params):
        y = jax.lax.dot(h, w.astype(jnp.bfloat16),
                        preferred_element_type=jnp.float32) + b
        h = jnp.maximum(y, 0.0).astype(jnp.bfloat16) if i < L - 1 else y
    return h.reshape(B, T, -1)


if __name__ == "__main__":
    key = jax.random.PRNGKey(0)

    # Small shapes implied by the forward: (batch, num_tokens, d_model).
    batch, tokens = 2, 8
    in_dim, hidden_dim, out_dim, num_layers = 32, 64, 32, 3
    key, kx, kp = jax.random.split(key, 3)
    x = jax.random.normal(kx, (batch, tokens, in_dim), jnp.float32)
    params = init_ffn_params(kp, in_dim, hidden_dim, out_dim, num_layers)
    ref = ffn_reference(params, x)

    # Fused (single pallas_call, weight-resident) path.
    out_fused = jax.block_until_ready(jax.jit(ffn_forward)(params, x))
    assert out_fused.shape == (batch, tokens, out_dim)
    assert jnp.allclose(out_fused, ref, atol=2e-2, rtol=2e-2)

    # Tiled fallback path, exercised explicitly.
    out_tiled = jax.block_until_ready(
        jax.jit(functools.partial(ffn_forward, force_tiled=True))(params, x))
    assert out_tiled.shape == (batch, tokens, out_dim)
    assert jnp.allclose(out_tiled, ref, atol=2e-2, rtol=2e-2)

    # Non-128-multiple dims to exercise per-layer padding in the fused path.
    batch2, tokens2 = 2, 100
    in2, hid2, out2, layers2 = 200, 300, 120, 3
    key, kx2, kp2 = jax.random.split(key, 3)
    x2 = jax.random.normal(kx2, (batch2, tokens2, in2), jnp.float32)
    params2 = init_ffn_params(kp2, in2, hid2, out2, layers2)
    ref2 = ffn_reference(params2, x2)
    out2_fused = jax.block_until_ready(jax.jit(ffn_forward)(params2, x2))
    assert out2_fused.shape == (batch2, tokens2, out2)
    assert jnp.allclose(out2_fused, ref2, atol=2e-2, rtol=2e-2)

    print("KERNEL_OK")
</pallas_src>

<mosaic_0001>
module attributes {stable_mosaic.version = 11 : i64} {
  func.func @_ffn_fused_kernel(%arg0: i32, %arg1: memref<16x128xbf16, #tpu.memory_space<vmem>>, %arg2: memref<128x128xbf16, #tpu.memory_space<vmem>>, %arg3: memref<1x128xf32, #tpu.memory_space<vmem>>, %arg4: memref<128x128xbf16, #tpu.memory_space<vmem>>, %arg5: memref<1x128xf32, #tpu.memory_space<vmem>>, %arg6: memref<128x128xbf16, #tpu.memory_space<vmem>>, %arg7: memref<1x128xf32, #tpu.memory_space<vmem>>, %arg8: memref<16x128xf32, #tpu.memory_space<vmem>>) attributes {dimension_semantics = [#tpu.dimension_semantics<parallel>], iteration_bounds = array<i64: 1>, scalar_prefetch = 0 : i64, scratch_operands = 0 : i64, tpu.core_type = #tpu.core_type<tc>, window_params = [{transform_indices = @transform_0, window_bounds = array<i64: 16, 128>}, {pipeline_mode = #tpu.pipeline_mode<synchronous>, transform_indices = @transform_1, window_bounds = array<i64: 128, 128>}, {pipeline_mode = #tpu.pipeline_mode<synchronous>, transform_indices = @transform_2, window_bounds = array<i64: 1, 128>}, {pipeline_mode = #tpu.pipeline_mode<synchronous>, transform_indices = @transform_3, window_bounds = array<i64: 128, 128>}, {pipeline_mode = #tpu.pipeline_mode<synchronous>, transform_indices = @transform_4, window_bounds = array<i64: 1, 128>}, {pipeline_mode = #tpu.pipeline_mode<synchronous>, transform_indices = @transform_5, window_bounds = array<i64: 128, 128>}, {pipeline_mode = #tpu.pipeline_mode<synchronous>, transform_indices = @transform_6, window_bounds = array<i64: 1, 128>}, {transform_indices = @transform_7, window_bounds = array<i64: 16, 128>}]} {
    %c0 = arith.constant 0 : index
    %c0_0 = arith.constant 0 : index
    %0 = vector.load %arg1[%c0, %c0_0] : memref<16x128xbf16, #tpu.memory_space<vmem>>, vector<16x128xbf16>
    %c0_1 = arith.constant 0 : index
    %c0_2 = arith.constant 0 : index
    %1 = vector.load %arg2[%c0_1, %c0_2] : memref<128x128xbf16, #tpu.memory_space<vmem>>, vector<128x128xbf16>
    %c0_3 = arith.constant 0 : index
    %c0_4 = arith.constant 0 : index
    %2 = vector.load %arg3[%c0_3, %c0_4] : memref<1x128xf32, #tpu.memory_space<vmem>>, vector<1x128xf32>
    %cst = arith.constant dense<0.000000e+00> : vector<16x128xf32>
    %3 = tpu.matmul %0, %1, %cst {dimension_numbers = #tpu.dot_dimension_numbers<[1], [0], [0], [1], [0, 0, 1, 1], [], []>} : vector<16x128xbf16>, vector<128x128xbf16>, vector<16x128xf32> -> vector<16x128xf32>
    %4 = vector.broadcast %2 : vector<1x128xf32> to vector<16x128xf32>
    %5 = arith.addf %3, %4 : vector<16x128xf32>
    %cst_5 = arith.constant 0.000000e+00 : f32
    %6 = vector.broadcast %cst_5 : f32 to vector<16x128xf32>
    %7 = arith.maximumf %5, %6 : vector<16x128xf32>
    %8 = arith.truncf %7 : vector<16x128xf32> to vector<16x128xbf16>
    %c0_6 = arith.constant 0 : index
    %c0_7 = arith.constant 0 : index
    %9 = vector.load %arg4[%c0_6, %c0_7] : memref<128x128xbf16, #tpu.memory_space<vmem>>, vector<128x128xbf16>
    %c0_8 = arith.constant 0 : index
    %c0_9 = arith.constant 0 : index
    %10 = vector.load %arg5[%c0_8, %c0_9] : memref<1x128xf32, #tpu.memory_space<vmem>>, vector<1x128xf32>
    %cst_10 = arith.constant dense<0.000000e+00> : vector<16x128xf32>
    %11 = tpu.matmul %8, %9, %cst_10 {dimension_numbers = #tpu.dot_dimension_numbers<[1], [0], [0], [1], [0, 0, 1, 1], [], []>} : vector<16x128xbf16>, vector<128x128xbf16>, vector<16x128xf32> -> vector<16x128xf32>
    %12 = vector.broadcast %10 : vector<1x128xf32> to vector<16x128xf32>
    %13 = arith.addf %11, %12 : vector<16x128xf32>
    %cst_11 = arith.constant 0.000000e+00 : f32
    %14 = vector.broadcast %cst_11 : f32 to vector<16x128xf32>
    %15 = arith.maximumf %13, %14 : vector<16x128xf32>
    %16 = arith.truncf %15 : vector<16x128xf32> to vector<16x128xbf16>
    %c0_12 = arith.constant 0 : index
    %c0_13 = arith.constant 0 : index
    %17 = vector.load %arg6[%c0_12, %c0_13] : memref<128x128xbf16, #tpu.memory_space<vmem>>, vector<128x128xbf16>
    %c0_14 = arith.constant 0 : index
    %c0_15 = arith.constant 0 : index
    %18 = vector.load %arg7[%c0_14, %c0_15] : memref<1x128xf32, #tpu.memory_space<vmem>>, vector<1x128xf32>
    %cst_16 = arith.constant dense<0.000000e+00> : vector<16x128xf32>
    %19 = tpu.matmul %16, %17, %cst_16 {dimension_numbers = #tpu.dot_dimension_numbers<[1], [0], [0], [1], [0, 0, 1, 1], [], []>} : vector<16x128xbf16>, vector<128x128xbf16>, vector<16x128xf32> -> vector<16x128xf32>
    %20 = vector.broadcast %18 : vector<1x128xf32> to vector<16x128xf32>
    %21 = arith.addf %19, %20 : vector<16x128xf32>
    %c0_17 = arith.constant 0 : index
    %c0_18 = arith.constant 0 : index
    %22 = vector.load %arg8[%c0_17, %c0_18] : memref<16x128xf32, #tpu.memory_space<vmem>>, vector<16x128xf32>
    tpu.vector_store %arg8[%c0_17, %c0_18], %21 {strides = array<i32>} : memref<16x128xf32, #tpu.memory_space<vmem>>, vector<16x128xf32>,
    return
  }
  func.func @transform_0(%arg0: i32) -> (i32, i32) {
    %c0_i32 = arith.constant 0 : i32
    %c0_i32_0 = arith.constant 0 : i32
    return %arg0, %c0_i32 : i32, i32
  }
  func.func @transform_1(%arg0: i32) -> (i32, i32) {
    %c0_i32 = arith.constant 0 : i32
    %c0_i32_0 = arith.constant 0 : i32
    %c0_i32_1 = arith.constant 0 : i32
    return %c0_i32, %c0_i32_0 : i32, i32
  }
  func.func @transform_2(%arg0: i32) -> (i32, i32) {
    %c0_i32 = arith.constant 0 : i32
    %c0_i32_0 = arith.constant 0 : i32
    %c0_i32_1 = arith.constant 0 : i32
    return %c0_i32, %c0_i32_0 : i32, i32
  }
  func.func @transform_3(%arg0: i32) -> (i32, i32) {
    %c0_i32 = arith.constant 0 : i32
    %c0_i32_0 = arith.constant 0 : i32
    %c0_i32_1 = arith.constant 0 : i32
    return %c0_i32, %c0_i32_0 : i32, i32
  }
  func.func @transform_4(%arg0: i32) -> (i32, i32) {
    %c0_i32 = arith.constant 0 : i32
    %c0_i32_0 = arith.constant 0 : i32
    %c0_i32_1 = arith.constant 0 : i32
    return %c0_i32, %c0_i32_0 : i32, i32
  }
  func.func @transform_5(%arg0: i32) -> (i32, i32) {
    %c0_i32 = arith.constant 0 : i32
    %c0_i32_0 = arith.constant 0 : i32
    %c0_i32_1 = arith.constant 0 : i32
    return %c0_i32, %c0_i32_0 : i32, i32
  }
  func.func @transform_6(%arg0: i32) -> (i32, i32) {
    %c0_i32 = arith.constant 0 : i32
    %c0_i32_0 = arith.constant 0 : i32
    %c0_i32_1 = arith.constant 0 : i32
    return %c0_i32, %c0_i32_0 : i32, i32
  }
  func.func @transform_7(%arg0: i32) -> (i32, i32) {
    %c0_i32 = arith.constant 0 : i32
    %c0_i32_0 = arith.constant 0 : i32
    return %arg0, %c0_i32 : i32, i32
  }
}

</mosaic_0001>

<llo_original>
// kernel: ffn_forward.1
$region0: #{ffn_forward.1}
  #allocation0 [shape = 'u32[]', space=smem, size = 0x4, offset = 0x4, fixed_abs, tag = 'smem constant byte address 0x4 - core index']
  #allocation1 [shape = 'u32[144,128]{1,0:T(1,128)}', space=vmem, size = 0x12000, scoped, tag = 'internal scratch']
  %s0 = inlined_call_operand.vmem [shape: bf16[16,128], index: 0, kind: input, shape index: {}]
  %s1 = inlined_call_operand.vmem [shape: bf16[128,128], index: 1, kind: input, shape index: {}]
  %s2 = inlined_call_operand.vmem [shape: f32[1,128], index: 2, kind: input, shape index: {}]
  %s3 = inlined_call_operand.vmem [shape: bf16[128,128], index: 3, kind: input, shape index: {}]
  %s4 = inlined_call_operand.vmem [shape: f32[1,128], index: 4, kind: input, shape index: {}]
  %s5 = inlined_call_operand.vmem [shape: bf16[128,128], index: 5, kind: input, shape index: {}]
  %s6 = inlined_call_operand.vmem [shape: f32[1,128], index: 6, kind: input, shape index: {}]
  %s7 = inlined_call_operand.vmem [shape: f32[16,128], index: 7, kind: output, shape index: {}]
  %s8 = sld [smem:[#allocation0]]
  $region38: #{ffn_forward.1} parent=0
    _
  %s10 = ssub.s32 1, %s8
  %s11 = scalar_select 0, %s10, %s8
  // Predicated region
  $region2: #{ffn_forward.1} parent=0 // pred_check
    _
  $region3: #{ffn_forward.1} parent=0 // pred_check_branch
    %13 = sbr.rel (0) target = $region5
  $region4: #{ffn_forward.1} parent=0 // pred_region
    _
  $region5: #{ffn_forward.1} parent=0 // pred_fallthru
    _
  // Predicated region
  $region6: #{ffn_forward.1} parent=0 // pred_check
    _
  $region7: #{ffn_forward.1} parent=0 // pred_check_branch
    %15 = sbr.rel (0) target = $region9
  $region8: #{ffn_forward.1} parent=0 // pred_region
    _
  $region9: #{ffn_forward.1} parent=0 // pred_fallthru
    _
  // Predicated region
  $region10: #{ffn_forward.1} parent=0 // pred_check
    _
  $region11: #{ffn_forward.1} parent=0 // pred_check_branch
    %17 = sbr.rel (0) target = $region13
  $region12: #{ffn_forward.1} parent=0 // pred_region
    _
  $region13: #{ffn_forward.1} parent=0 // pred_fallthru
    _
  // Predicated region
  $region14: #{ffn_forward.1} parent=0 // pred_check
    _
  $region15: #{ffn_forward.1} parent=0 // pred_check_branch
    %19 = sbr.rel (0) target = $region17
  $region16: #{ffn_forward.1} parent=0 // pred_region
    _
  $region17: #{ffn_forward.1} parent=0 // pred_fallthru
    _
  // Predicated region
  $region18: #{ffn_forward.1} parent=0 // pred_check
    _
  $region19: #{ffn_forward.1} parent=0 // pred_check_branch
    %21 = sbr.rel (0) target = $region21
  $region20: #{ffn_forward.1} parent=0 // pred_region
    _
  $region21: #{ffn_forward.1} parent=0 // pred_fallthru
    _
  // Predicated region
  $region22: #{ffn_forward.1} parent=0 // pred_check
    _
  $region23: #{ffn_forward.1} parent=0 // pred_check_branch
    %23 = sbr.rel (0) target = $region25
  $region24: #{ffn_forward.1} parent=0 // pred_region
    _
  $region25: #{ffn_forward.1} parent=0 // pred_fallthru
    _
  // Predicated region
  $region26: #{ffn_forward.1} parent=0 // pred_check
    _
  $region27: #{ffn_forward.1} parent=0 // pred_check_branch
    %25 = sbr.rel (0) target = $region29
  $region28: #{ffn_forward.1} parent=0 // pred_region
    _
  $region29: #{ffn_forward.1} parent=0 // pred_fallthru
    _
  %v27 = vld [vmem:[%s0] sm:$0xf]
  %v28 = vld [vmem:[%s0 + $0x4] sm:$0xf]
  %v29 = vld [vmem:[%s1] sm:$0xf]
  %v30 = vld [vmem:[%s1 + $0x4] sm:$0xf]
  %v31 = vld [vmem:[%s1 + $0x8] sm:$0xf]
  %v32 = vld [vmem:[%s1 + $0xc] sm:$0xf]
  %v33 = vld [vmem:[%s1 + $0x10] sm:$0xf]
  %v34 = vld [vmem:[%s1 + $0x14] sm:$0xf]
  %v35 = vld [vmem:[%s1 + $0x18] sm:$0xf]
  %v36 = vld [vmem:[%s1 + $0x1c] sm:$0xf]
  %v37 = vld [vmem:[%s1 + $0x20] sm:$0xf]
  %v38 = vld [vmem:[%s1 + $0x24] sm:$0xf]
  %v39 = vld [vmem:[%s1 + $0x28] sm:$0xf]
  %v40 = vld [vmem:[%s1 + $0x2c] sm:$0xf]
  %v41 = vld [vmem:[%s1 + $0x30] sm:$0xf]
  %v42 = vld [vmem:[%s1 + $0x34] sm:$0xf]
  %v43 = vld [vmem:[%s1 + $0x38] sm:$0xf]
  %v44 = vld [vmem:[%s1 + $0x3c] sm:$0xf]
  %v45 = vld [vmem:[%s2] sm:$0x1]
  %v47 = vlaneseq
  %v48 = vshrl.u32 %v47, 7
  %v49 = vsub.s32 0, %v48
  %v50 = vrot.slane %v45, %v49
  %v54 = vunpack.c.l.b16 %v27
  %v55 = vunpack.c.l.b16 %v28
  %v56 = vpack.c.b16 %v55, %v54
  %v74 = vunpack.c.l.b16 %v29
  %v75 = vunpack.c.l.b16 %v30
  %v76 = vunpack.c.l.b16 %v31
  %v77 = vunpack.c.l.b16 %v32
  %v78 = vunpack.c.l.b16 %v33
  %v79 = vunpack.c.l.b16 %v34
  %v80 = vunpack.c.l.b16 %v35
  %v81 = vunpack.c.l.b16 %v36
  %v82 = vunpack.c.l.b16 %v37
  %v83 = vunpack.c.l.b16 %v38
  %v84 = vunpack.c.l.b16 %v39
  %v85 = vunpack.c.l.b16 %v40
  %v86 = vunpack.c.l.b16 %v41
  %v87 = vunpack.c.l.b16 %v42
  %v88 = vunpack.c.l.b16 %v43
  %v89 = vunpack.c.l.b16 %v44
  %v90 = vpack.c.b16 %v75, %v74
  %v91 = vpack.c.b16 %v77, %v76
  %v92 = vpack.c.b16 %v79, %v78
  %v93 = vpack.c.b16 %v81, %v80
  %v94 = vpack.c.b16 %v83, %v82
  %v95 = vpack.c.b16 %v85, %v84
  %v96 = vpack.c.b16 %v87, %v86
  %v97 = vpack.c.b16 %v89, %v88
  %106 = vmatprep.subr.bf16.mxu0 0
  %107 = vmatpush1.bf16.msra.mxu0 %v90
  %108 = vmatprep.subr.bf16.mxu0 0
  %109 = vmatpush1.bf16.msra.mxu0 %v91
  %110 = vmatprep.subr.bf16.mxu0 0
  %111 = vmatpush1.bf16.msra.mxu0 %v92
  %112 = vmatprep.subr.bf16.mxu0 0
  %113 = vmatpush1.bf16.msra.mxu0 %v93
  %114 = vmatprep.subr.bf16.mxu0 0
  %115 = vmatpush1.bf16.msra.mxu0 %v94
  %116 = vmatprep.subr.bf16.mxu0 0
  %117 = vmatpush1.bf16.msra.mxu0 %v95
  %118 = vmatprep.subr.bf16.mxu0 0
  %119 = vmatpush1.bf16.msra.mxu0 %v96
  %120 = vmatprep.subr.bf16.mxu0 0
  %121 = vmatpush1.bf16.msra.mxu0 %v97
  %122 = vmatprep.subr.bf16.mxu0 0
  %123 = vmatpush1.bf16.msra.mxu0 0
  %124 = vmatprep.subr.bf16.mxu0 0
  %125 = vmatpush1.bf16.msra.mxu0 0
  %126 = vmatprep.subr.bf16.mxu0 0
  %127 = vmatpush1.bf16.msra.mxu0 0
  %128 = vmatprep.subr.bf16.mxu0 0
  %129 = vmatpush1.bf16.msra.mxu0 0
  %130 = vmatprep.subr.bf16.mxu0 0
  %131 = vmatpush1.bf16.msra.mxu0 0
  %132 = vmatprep.subr.bf16.mxu0 0
  %133 = vmatpush1.bf16.msra.mxu0 0
  %134 = vmatprep.subr.bf16.mxu0 0
  %135 = vmatpush1.bf16.msra.mxu0 0
  %136 = vmatprep.subr.bf16.mxu0 0
  %137 = vmatpush1.bf16.msra.mxu0 0
  %138 = vmatprep.mubr.bf16.mxu0 0
  %139 = vmatmul.mubr.bf16.gmra.mrb[0].mxu0 %v56
  %v140 = vpop.f32.mrb[0].mxu0
  %v141 = vadd.f32 %v50, %v140
  %v142 = vpop.f32.mrb[0].mxu0
  %v143 = vpop.f32.mrb[0].mxu0
  %v144 = vadd.f32 %v50, %v143
  %v145 = vpop.f32.mrb[0].mxu0
  %146 = vdwg.mxu0
  %v147 = vmax.f32 %v141, 0.0
  %v148 = vmax.f32 %v144, 0.0
  %v149 = vpack.c.bf16 %v148, %v147
  %v150 = vld [vmem:[%s3] sm:$0xf]
  %v151 = vld [vmem:[%s3 + $0x4] sm:$0xf]
  %v152 = vld [vmem:[%s3 + $0x8] sm:$0xf]
  %v153 = vld [vmem:[%s3 + $0xc] sm:$0xf]
  %v154 = vld [vmem:[%s3 + $0x10] sm:$0xf]
  %v155 = vld [vmem:[%s3 + $0x14] sm:$0xf]
  %v156 = vld [vmem:[%s3 + $0x18] sm:$0xf]
  %v157 = vld [vmem:[%s3 + $0x1c] sm:$0xf]
  %v158 = vld [vmem:[%s3 + $0x20] sm:$0xf]
  %v159 = vld [vmem:[%s3 + $0x24] sm:$0xf]
  %v160 = vld [vmem:[%s3 + $0x28] sm:$0xf]
  %v161 = vld [vmem:[%s3 + $0x2c] sm:$0xf]
  %v162 = vld [vmem:[%s3 + $0x30] sm:$0xf]
  %v163 = vld [vmem:[%s3 + $0x34] sm:$0xf]
  %v164 = vld [vmem:[%s3 + $0x38] sm:$0xf]
  %v165 = vld [vmem:[%s3 + $0x3c] sm:$0xf]
  %v166 = vld [vmem:[%s4] sm:$0x1]
  %v168 = vlaneseq
  %v169 = vshrl.u32 %v168, 7
  %v170 = vsub.s32 0, %v169
  %v171 = vrot.slane %v166, %v170
  %v189 = vunpack.c.l.b16 %v150
  %v190 = vunpack.c.l.b16 %v151
  %v191 = vunpack.c.l.b16 %v152
  %v192 = vunpack.c.l.b16 %v153
  %v193 = vunpack.c.l.b16 %v154
  %v194 = vunpack.c.l.b16 %v155
  %v195 = vunpack.c.l.b16 %v156
  %v196 = vunpack.c.l.b16 %v157
  %v197 = vunpack.c.l.b16 %v158
  %v198 = vunpack.c.l.b16 %v159
  %v199 = vunpack.c.l.b16 %v160
  %v200 = vunpack.c.l.b16 %v161
  %v201 = vunpack.c.l.b16 %v162
  %v202 = vunpack.c.l.b16 %v163
  %v203 = vunpack.c.l.b16 %v164
  %v204 = vunpack.c.l.b16 %v165
  %v205 = vpack.c.b16 %v190, %v189
  %v206 = vpack.c.b16 %v192, %v191
  %v207 = vpack.c.b16 %v194, %v193
  %v208 = vpack.c.b16 %v196, %v195
  %v209 = vpack.c.b16 %v198, %v197
  %v210 = vpack.c.b16 %v200, %v199
  %v211 = vpack.c.b16 %v202, %v201
  %v212 = vpack.c.b16 %v204, %v203
  %221 = vmatprep.subr.bf16.mxu0 0
  %222 = vmatpush1.bf16.msra.mxu0 %v205
  %223 = vmatprep.subr.bf16.mxu0 0
  %224 = vmatpush1.bf16.msra.mxu0 %v206
  %225 = vmatprep.subr.bf16.mxu0 0
  %226 = vmatpush1.bf16.msra.mxu0 %v207
  %227 = vmatprep.subr.bf16.mxu0 0
  %228 = vmatpush1.bf16.msra.mxu0 %v208
  %229 = vmatprep.subr.bf16.mxu0 0
  %230 = vmatpush1.bf16.msra.mxu0 %v209
  %231 = vmatprep.subr.bf16.mxu0 0
  %232 = vmatpush1.bf16.msra.mxu0 %v210
  %233 = vmatprep.subr.bf16.mxu0 0
  %234 = vmatpush1.bf16.msra.mxu0 %v211
  %235 = vmatprep.subr.bf16.mxu0 0
  %236 = vmatpush1.bf16.msra.mxu0 %v212
  %237 = vmatprep.subr.bf16.mxu0 0
  %238 = vmatpush1.bf16.msra.mxu0 0
  %239 = vmatprep.subr.bf16.mxu0 0
  %240 = vmatpush1.bf16.msra.mxu0 0
  %241 = vmatprep.subr.bf16.mxu0 0
  %242 = vmatpush1.bf16.msra.mxu0 0
  %243 = vmatprep.subr.bf16.mxu0 0
  %244 = vmatpush1.bf16.msra.mxu0 0
  %245 = vmatprep.subr.bf16.mxu0 0
  %246 = vmatpush1.bf16.msra.mxu0 0
  %247 = vmatprep.subr.bf16.mxu0 0
  %248 = vmatpush1.bf16.msra.mxu0 0
  %249 = vmatprep.subr.bf16.mxu0 0
  %250 = vmatpush1.bf16.msra.mxu0 0
  %251 = vmatprep.subr.bf16.mxu0 0
  %252 = vmatpush1.bf16.msra.mxu0 0
  %253 = vmatprep.mubr.bf16.mxu0 0
  %254 = vmatmul.mubr.bf16.gmra.mrb[0].mxu0 %v149
  %v255 = vpop.f32.mrb[0].mxu0
  %v256 = vadd.f32 %v171, %v255
  %v257 = vpop.f32.mrb[0].mxu0
  %v258 = vpop.f32.mrb[0].mxu0
  %v259 = vadd.f32 %v171, %v258
  %v260 = vpop.f32.mrb[0].mxu0
  %261 = vdwg.mxu0
  %v262 = vmax.f32 %v256, 0.0
  %v263 = vmax.f32 %v259, 0.0
  %v264 = vpack.c.bf16 %v263, %v262
  %v265 = vld [vmem:[%s5] sm:$0xf]
  %v266 = vld [vmem:[%s5 + $0x4] sm:$0xf]
  %v267 = vld [vmem:[%s5 + $0x8] sm:$0xf]
  %v268 = vld [vmem:[%s5 + $0xc] sm:$0xf]
  %v269 = vld [vmem:[%s5 + $0x10] sm:$0xf]
  %v270 = vld [vmem:[%s5 + $0x14] sm:$0xf]
  %v271 = vld [vmem:[%s5 + $0x18] sm:$0xf]
  %v272 = vld [vmem:[%s5 + $0x1c] sm:$0xf]
  %v273 = vld [vmem:[%s5 + $0x20] sm:$0xf]
  %v274 = vld [vmem:[%s5 + $0x24] sm:$0xf]
  %v275 = vld [vmem:[%s5 + $0x28] sm:$0xf]
  %v276 = vld [vmem:[%s5 + $0x2c] sm:$0xf]
  %v277 = vld [vmem:[%s5 + $0x30] sm:$0xf]
  %v278 = vld [vmem:[%s5 + $0x34] sm:$0xf]
  %v279 = vld [vmem:[%s5 + $0x38] sm:$0xf]
  %v280 = vld [vmem:[%s5 + $0x3c] sm:$0xf]
  %v281 = vld [vmem:[%s6] sm:$0x1]
  %v283 = vlaneseq
  %v284 = vshrl.u32 %v283, 7
  %v285 = vsub.s32 0, %v284
  %v286 = vrot.slane %v281, %v285
  %v304 = vunpack.c.l.b16 %v265
  %v305 = vunpack.c.l.b16 %v266
  %v306 = vunpack.c.l.b16 %v267
  %v307 = vunpack.c.l.b16 %v268
  %v308 = vunpack.c.l.b16 %v269
  %v309 = vunpack.c.l.b16 %v270
  %v310 = vunpack.c.l.b16 %v271
  %v311 = vunpack.c.l.b16 %v272
  %v312 = vunpack.c.l.b16 %v273
  %v313 = vunpack.c.l.b16 %v274
  %v314 = vunpack.c.l.b16 %v275
  %v315 = vunpack.c.l.b16 %v276
  %v316 = vunpack.c.l.b16 %v277
  %v317 = vunpack.c.l.b16 %v278
  %v318 = vunpack.c.l.b16 %v279
  %v319 = vunpack.c.l.b16 %v280
  %v320 = vpack.c.b16 %v305, %v304
  %v321 = vpack.c.b16 %v307, %v306
  %v322 = vpack.c.b16 %v309, %v308
  %v323 = vpack.c.b16 %v311, %v310
  %v324 = vpack.c.b16 %v313, %v312
  %v325 = vpack.c.b16 %v315, %v314
  %v326 = vpack.c.b16 %v317, %v316
  %v327 = vpack.c.b16 %v319, %v318
  %336 = vmatprep.subr.bf16.mxu0 0
  %337 = vmatpush1.bf16.msra.mxu0 %v320
  %338 = vmatprep.subr.bf16.mxu0 0
  %339 = vmatpush1.bf16.msra.mxu0 %v321
  %340 = vmatprep.subr.bf16.mxu0 0
  %341 = vmatpush1.bf16.msra.mxu0 %v322
  %342 = vmatprep.subr.bf16.mxu0 0
  %343 = vmatpush1.bf16.msra.mxu0 %v323
  %344 = vmatprep.subr.bf16.mxu0 0
  %345 = vmatpush1.bf16.msra.mxu0 %v324
  %346 = vmatprep.subr.bf16.mxu0 0
  %347 = vmatpush1.bf16.msra.mxu0 %v325
  %348 = vmatprep.subr.bf16.mxu0 0
  %349 = vmatpush1.bf16.msra.mxu0 %v326
  %350 = vmatprep.subr.bf16.mxu0 0
  %351 = vmatpush1.bf16.msra.mxu0 %v327
  %352 = vmatprep.subr.bf16.mxu0 0
  %353 = vmatpush1.bf16.msra.mxu0 0
  %354 = vmatprep.subr.bf16.mxu0 0
  %355 = vmatpush1.bf16.msra.mxu0 0
  %356 = vmatprep.subr.bf16.mxu0 0
  %357 = vmatpush1.bf16.msra.mxu0 0
  %358 = vmatprep.subr.bf16.mxu0 0
  %359 = vmatpush1.bf16.msra.mxu0 0
  %360 = vmatprep.subr.bf16.mxu0 0
  %361 = vmatpush1.bf16.msra.mxu0 0
  %362 = vmatprep.subr.bf16.mxu0 0
  %363 = vmatpush1.bf16.msra.mxu0 0
  %364 = vmatprep.subr.bf16.mxu0 0
  %365 = vmatpush1.bf16.msra.mxu0 0
  %366 = vmatprep.subr.bf16.mxu0 0
  %367 = vmatpush1.bf16.msra.mxu0 0
  %368 = vmatprep.mubr.bf16.mxu0 0
  %369 = vmatmul.mubr.bf16.gmra.mrb[0].mxu0 %v264
  %v370 = vpop.f32.mrb[0].mxu0
  %v371 = vadd.f32 %v286, %v370
  %v372 = vpop.f32.mrb[0].mxu0
  %v373 = vpop.f32.mrb[0].mxu0
  %v374 = vadd.f32 %v286, %v373
  %v375 = vpop.f32.mrb[0].mxu0
  %376 = vdwg.mxu0
  %377 = vst [vmem:[%s7] sm:$0xff] %v371
  %378 = vst [vmem:[%s7 + $0x8] sm:$0xff] %v374
  // Predicated region
  $region30: #{ffn_forward.1} parent=0 // pred_check
    _
  $region31: #{ffn_forward.1} parent=0 // pred_check_branch
    %380 = sbr.rel (0) target = $region33
  $region32: #{ffn_forward.1} parent=0 // pred_region
    _
  $region33: #{ffn_forward.1} parent=0 // pred_fallthru
    _
  // Predicated region
  $region34: #{ffn_forward.1} parent=0 // pred_check
    _
  $region35: #{ffn_forward.1} parent=0 // pred_check_branch
    %382 = sbr.rel (0) target = $region37
  $region36: #{ffn_forward.1} parent=0 // pred_region
    _
  $region37: #{ffn_forward.1} parent=0 // pred_fallthru
    _

</llo_original>
